<compile_context>
chip_gen: v6e
topology: v6e:2x2x1
jax: 0.10.0
libtpu: 0.0.40
codegen_flags: <defaults>
</compile_context>

<pallas_src>
import jax
import jax.numpy as jnp
from jax.experimental import pallas as pl
from jax.experimental.pallas import tpu as pltpu

LANE = 128


def _round_up(n, m):
    return ((n + m - 1) // m) * m


def mlp_kernel(x_ref, w1_ref, b1_ref, w2_ref, b2_ref, w3_ref, b3_ref, o_ref):
    # x arrives f32 straight from HBM; cast to the MXU streaming dtype in-kernel
    # (avoids a separate per-call XLA cast op + HBM round trip).
    x = x_ref[...].astype(w1_ref.dtype)
    # fc1: MXU matmul with f32 accumulation; bias + ReLU in f32 on the VPU.
    h1 = jnp.dot(x, w1_ref[...], preferred_element_type=jnp.float32)
    h1 = jnp.maximum(h1 + b1_ref[...], 0.0)
    # fc2 (hidden padded to 128 lanes at prepare time -> lane-dense vregs)
    h2 = jnp.dot(h1.astype(w2_ref.dtype), w2_ref[...],
                 preferred_element_type=jnp.float32)
    h2 = jnp.maximum(h2 + b2_ref[...], 0.0)
    # fc3 (logits, lane-dense padded classifier -> unmasked vst)
    out = jnp.dot(h2.astype(w3_ref.dtype), w3_ref[...],
                  preferred_element_type=jnp.float32)
    o_ref[...] = (out + b3_ref[...]).astype(o_ref.dtype)


def prepare_params(params, *, compute_dtype=jnp.bfloat16):
    """One-time parameter prep (hoisted out of the per-call wrapper):
       * zero-pad fc2-out / fc3-in hidden dim and the classifier dim up to 128 lanes
       * cast weights to the MXU streaming dtype (bf16 default); biases stay f32
       Use compute_dtype=jnp.float32 for exact PyTorch f32 parity.
    """
    w1, b1, w2, b2, w3, b3 = params
    num_classes = w3.shape[1]
    h2 = w2.shape[1]
    h2_pad = _round_up(h2, LANE)
    if h2_pad != h2:                       # lane-dense fc2 output / fc3 contraction
        w2 = jnp.pad(w2, ((0, 0), (0, h2_pad - h2)))
        b2 = jnp.pad(b2, ((0, 0), (0, h2_pad - h2)))
        w3 = jnp.pad(w3, ((0, h2_pad - h2), (0, 0)))
    c_pad = _round_up(num_classes, LANE)
    if c_pad != num_classes:               # lane-dense logits
        w3 = jnp.pad(w3, ((0, 0), (0, c_pad - num_classes)))
        b3 = jnp.pad(b3, ((0, 0), (0, c_pad - num_classes)))
    return {
        "w1": w1.astype(compute_dtype), "b1": b1.astype(jnp.float32),
        "w2": w2.astype(compute_dtype), "b2": b2.astype(jnp.float32),
        "w3": w3.astype(compute_dtype), "b3": b3.astype(jnp.float32),
        "num_classes": num_classes,
    }


def diagnosis_model_forward(x, prepared, *, batch_tile=2048, jnp_fallback_batch=0):
    """Fused MLP forward in one Pallas kernel, tiled over the batch.
       `prepared` must come from prepare_params()."""
    w1, b1 = prepared["w1"], prepared["b1"]
    w2, b2 = prepared["w2"], prepared["b2"]
    w3, b3 = prepared["w3"], prepared["b3"]
    num_classes = prepared["num_classes"]
    B, D_in = x.shape
    H1 = w1.shape[1]
    H2 = w2.shape[1]
    C_pad = w3.shape[1]
    compute_dtype = w1.dtype

    # Tiny-batch path: XLA fuses a 3-layer MLP of this size fine; skip Pallas dispatch.
    if B <= jnp_fallback_batch:
        h1 = jnp.maximum(jnp.dot(x.astype(compute_dtype), w1,
                                 preferred_element_type=jnp.float32) + b1, 0.0)
        h2 = jnp.maximum(jnp.dot(h1.astype(compute_dtype), w2,
                                 preferred_element_type=jnp.float32) + b2, 0.0)
        out = jnp.dot(h2.astype(compute_dtype), w3,
                      preferred_element_type=jnp.float32) + b3
        return out[:, :num_classes]

    # --- batch tiling --------------------------------------------------------
    gran = 16 if compute_dtype == jnp.bfloat16 else 8   # output sublane packing
    tile = min(batch_tile, _round_up(B, gran))
    if B > gran:   # guarantee >=2 grid steps so both v7x TensorCores get work
        tile = min(tile, _round_up(pl.cdiv(B, 2), gran))
    tile = max(gran, _round_up(tile, gran))
    B_pad = _round_up(B, tile)
    if B_pad != B:
        x = jnp.pad(x, ((0, B_pad - B), (0, 0)))
    grid = (B_pad // tile,)

    flops = 2 * B_pad * (D_in * H1 + H1 * H2 + H2 * C_pad)
    bytes_accessed = (
        B_pad * D_in * x.dtype.itemsize
        + sum(a.size * a.dtype.itemsize for a in (w1, b1, w2, b2, w3, b3))
        + B_pad * C_pad * jnp.dtype(compute_dtype).itemsize)

    compiler_kwargs = dict(dimension_semantics=("parallel",))
    if tile > 2048:   # only if the caller raises the tile past the default (v5e 16 MiB)
        compiler_kwargs["vmem_limit_bytes"] = 48 * 1024 * 1024

    out = pl.pallas_call(
        mlp_kernel,
        out_shape=jax.ShapeDtypeStruct((B_pad, C_pad), compute_dtype),
        grid_spec=pltpu.PrefetchScalarGridSpec(
            num_scalar_prefetch=0,
            grid=grid,
            in_specs=[
                pl.BlockSpec((tile, D_in), lambda i: (i, 0)),    # x tile (f32)
                # weights/biases: constant block index -> resident across the grid
                pl.BlockSpec((D_in, H1), lambda i: (0, 0)),      # W1
                pl.BlockSpec((1, H1), lambda i: (0, 0)),         # b1
                pl.BlockSpec((H1, H2), lambda i: (0, 0)),        # W2 (H2 padded)
                pl.BlockSpec((1, H2), lambda i: (0, 0)),         # b2
                pl.BlockSpec((H2, C_pad), lambda i: (0, 0)),     # W3 (padded)
                pl.BlockSpec((1, C_pad), lambda i: (0, 0)),      # b3 (padded)
            ],
            out_specs=pl.BlockSpec((tile, C_pad), lambda i: (i, 0)),
        ),
        compiler_params=pltpu.CompilerParams(**compiler_kwargs),
        cost_estimate=pl.CostEstimate(
            flops=flops, transcendentals=0, bytes_accessed=bytes_accessed),
    )(x, w1, b1, w2, b2, w3, b3)

    # Drop batch/lane padding; hand back f32 logits for PyTorch-like downstream use.
    return out[:B, :num_classes].astype(jnp.float32)


def init_params(key, input_size, num_classes):
    """Deterministic init mimicking nn.Linear default (uniform in +-1/sqrt(fan_in))."""
    dims = [(input_size, 128), (128, 64), (64, num_classes)]
    params = []
    for (fan_in, fan_out) in dims:
        key, kw, kb = jax.random.split(key, 3)
        bound = 1.0 / jnp.sqrt(fan_in)
        w = jax.random.uniform(kw, (fan_in, fan_out), jnp.float32, -bound, bound)
        b = jax.random.uniform(kb, (1, fan_out), jnp.float32, -bound, bound)
        params += [w, b]
    return tuple(params)


def reference_forward(x, params, dtype=jnp.float32):
    """Pure-JAX reference. dtype=bfloat16 mirrors the kernel's casting exactly."""
    w1, b1, w2, b2, w3, b3 = params
    c = lambda a: a.astype(dtype)
    h1 = jnp.maximum(
        jnp.dot(c(x), c(w1), preferred_element_type=jnp.float32) + b1, 0.0)
    h2 = jnp.maximum(
        jnp.dot(c(h1), c(w2), preferred_element_type=jnp.float32) + b2, 0.0)
    out = jnp.dot(c(h2), c(w3), preferred_element_type=jnp.float32) + b3
    if dtype != jnp.float32:
        out = out.astype(dtype).astype(jnp.float32)   # kernel stores logits in `dtype`
    return out


if __name__ == "__main__":
    key = jax.random.PRNGKey(0)
    batch = 8
    input_size = 32      # X.shape[1] in the original script (synthetic choice)
    num_classes = 8      # len(le.classes_) in the original script (synthetic choice)

    k_x, k_p, k_x2 = jax.random.split(key, 3)
    x = jax.random.normal(k_x, (batch, input_size), jnp.float32)
    params = init_params(k_p, input_size, num_classes)

    # One-time parameter prep (hoisted out of the per-call wrapper).
    prepared = prepare_params(params)
    fwd = jax.jit(lambda xx: diagnosis_model_forward(xx, prepared))

    # Small-batch path through the kernel (single grid step).
    out = jax.block_until_ready(fwd(x))
    assert out.shape == (batch, num_classes)
    ref_f32 = reference_forward(x, params)                       # f32 semantics
    ref_bf16 = reference_forward(x, params, dtype=jnp.bfloat16)  # matches kernel math
    assert jnp.allclose(out, ref_bf16, atol=2e-2, rtol=2e-2), "mismatch vs bf16 reference"
    assert jnp.allclose(out, ref_f32, atol=5e-2, rtol=5e-2), "mismatch vs f32 reference"

    # Multi-step grid path (>=2 parallel steps, ragged batch -> padding path).
    big_batch = 3000
    xb = jax.random.normal(k_x2, (big_batch, input_size), jnp.float32)
    out_b = jax.block_until_ready(fwd(xb))
    assert out_b.shape == (big_batch, num_classes)
    ref_b = reference_forward(xb, params)
    assert jnp.allclose(out_b, ref_b, atol=5e-2, rtol=5e-2), "mismatch (tiled batch)"

    # Tiny-batch plain-jnp fallback (opt-in) agrees with the kernel.
    out_fb = jax.block_until_ready(
        diagnosis_model_forward(x, prepared, jnp_fallback_batch=128))
    assert out_fb.shape == (batch, num_classes)
    assert jnp.allclose(out_fb, out, atol=2e-2, rtol=2e-2), "mismatch (jnp fallback)"

    print("KERNEL_OK")
</pallas_src>

<mosaic_0001>
module attributes {stable_mosaic.version = 11 : i64} {
  func.func @mlp_kernel(%arg0: i32, %arg1: memref<16x32xf32, #tpu.memory_space<vmem>>, %arg2: memref<32x128xbf16, #tpu.memory_space<vmem>>, %arg3: memref<1x128xf32, #tpu.memory_space<vmem>>, %arg4: memref<128x128xbf16, #tpu.memory_space<vmem>>, %arg5: memref<1x128xf32, #tpu.memory_space<vmem>>, %arg6: memref<128x128xbf16, #tpu.memory_space<vmem>>, %arg7: memref<1x128xf32, #tpu.memory_space<vmem>>, %arg8: memref<16x128xbf16, #tpu.memory_space<vmem>>) attributes {dimension_semantics = [#tpu.dimension_semantics<parallel>], iteration_bounds = array<i64: 1>, scalar_prefetch = 0 : i64, scratch_operands = 0 : i64, tpu.core_type = #tpu.core_type<tc>, window_params = [{transform_indices = @transform_0, window_bounds = array<i64: 16, 32>}, {pipeline_mode = #tpu.pipeline_mode<synchronous>, transform_indices = @transform_1, window_bounds = array<i64: 32, 128>}, {pipeline_mode = #tpu.pipeline_mode<synchronous>, transform_indices = @transform_2, window_bounds = array<i64: 1, 128>}, {pipeline_mode = #tpu.pipeline_mode<synchronous>, transform_indices = @transform_3, window_bounds = array<i64: 128, 128>}, {pipeline_mode = #tpu.pipeline_mode<synchronous>, transform_indices = @transform_4, window_bounds = array<i64: 1, 128>}, {pipeline_mode = #tpu.pipeline_mode<synchronous>, transform_indices = @transform_5, window_bounds = array<i64: 128, 128>}, {pipeline_mode = #tpu.pipeline_mode<synchronous>, transform_indices = @transform_6, window_bounds = array<i64: 1, 128>}, {transform_indices = @transform_7, window_bounds = array<i64: 16, 128>}]} {
    %c0 = arith.constant 0 : index
    %c0_0 = arith.constant 0 : index
    %0 = vector.load %arg1[%c0, %c0_0] : memref<16x32xf32, #tpu.memory_space<vmem>>, vector<16x32xf32>
    %1 = arith.truncf %0 : vector<16x32xf32> to vector<16x32xbf16>
    %c0_1 = arith.constant 0 : index
    %c0_2 = arith.constant 0 : index
    %2 = vector.load %arg2[%c0_1, %c0_2] : memref<32x128xbf16, #tpu.memory_space<vmem>>, vector<32x128xbf16>
    %cst = arith.constant dense<0.000000e+00> : vector<16x128xf32>
    %3 = tpu.matmul %1, %2, %cst {dimension_numbers = #tpu.dot_dimension_numbers<[1], [0], [0], [1], [0, 0, 1, 1], [], []>} : vector<16x32xbf16>, vector<32x128xbf16>, vector<16x128xf32> -> vector<16x128xf32>
    %c0_3 = arith.constant 0 : index
    %c0_4 = arith.constant 0 : index
    %4 = vector.load %arg3[%c0_3, %c0_4] : memref<1x128xf32, #tpu.memory_space<vmem>>, vector<1x128xf32>
    %5 = vector.broadcast %4 : vector<1x128xf32> to vector<16x128xf32>
    %6 = arith.addf %3, %5 : vector<16x128xf32>
    %cst_5 = arith.constant 0.000000e+00 : f32
    %7 = vector.broadcast %cst_5 : f32 to vector<16x128xf32>
    %8 = arith.maximumf %6, %7 : vector<16x128xf32>
    %9 = arith.truncf %8 : vector<16x128xf32> to vector<16x128xbf16>
    %c0_6 = arith.constant 0 : index
    %c0_7 = arith.constant 0 : index
    %10 = vector.load %arg4[%c0_6, %c0_7] : memref<128x128xbf16, #tpu.memory_space<vmem>>, vector<128x128xbf16>
    %cst_8 = arith.constant dense<0.000000e+00> : vector<16x128xf32>
    %11 = tpu.matmul %9, %10, %cst_8 {dimension_numbers = #tpu.dot_dimension_numbers<[1], [0], [0], [1], [0, 0, 1, 1], [], []>} : vector<16x128xbf16>, vector<128x128xbf16>, vector<16x128xf32> -> vector<16x128xf32>
    %c0_9 = arith.constant 0 : index
    %c0_10 = arith.constant 0 : index
    %12 = vector.load %arg5[%c0_9, %c0_10] : memref<1x128xf32, #tpu.memory_space<vmem>>, vector<1x128xf32>
    %13 = vector.broadcast %12 : vector<1x128xf32> to vector<16x128xf32>
    %14 = arith.addf %11, %13 : vector<16x128xf32>
    %cst_11 = arith.constant 0.000000e+00 : f32
    %15 = vector.broadcast %cst_11 : f32 to vector<16x128xf32>
    %16 = arith.maximumf %14, %15 : vector<16x128xf32>
    %17 = arith.truncf %16 : vector<16x128xf32> to vector<16x128xbf16>
    %c0_12 = arith.constant 0 : index
    %c0_13 = arith.constant 0 : index
    %18 = vector.load %arg6[%c0_12, %c0_13] : memref<128x128xbf16, #tpu.memory_space<vmem>>, vector<128x128xbf16>
    %cst_14 = arith.constant dense<0.000000e+00> : vector<16x128xf32>
    %19 = tpu.matmul %17, %18, %cst_14 {dimension_numbers = #tpu.dot_dimension_numbers<[1], [0], [0], [1], [0, 0, 1, 1], [], []>} : vector<16x128xbf16>, vector<128x128xbf16>, vector<16x128xf32> -> vector<16x128xf32>
    %c0_15 = arith.constant 0 : index
    %c0_16 = arith.constant 0 : index
    %20 = vector.load %arg7[%c0_15, %c0_16] : memref<1x128xf32, #tpu.memory_space<vmem>>, vector<1x128xf32>
    %21 = vector.broadcast %20 : vector<1x128xf32> to vector<16x128xf32>
    %22 = arith.addf %19, %21 : vector<16x128xf32>
    %23 = arith.truncf %22 : vector<16x128xf32> to vector<16x128xbf16>
    %c0_17 = arith.constant 0 : index
    %c0_18 = arith.constant 0 : index
    %24 = vector.load %arg8[%c0_17, %c0_18] : memref<16x128xbf16, #tpu.memory_space<vmem>>, vector<16x128xbf16>
    tpu.vector_store %arg8[%c0_17, %c0_18], %23 {strides = array<i32>} : memref<16x128xbf16, #tpu.memory_space<vmem>>, vector<16x128xbf16>,
    return
  }
  func.func @transform_0(%arg0: i32) -> (i32, i32) {
    %c0_i32 = arith.constant 0 : i32
    %c0_i32_0 = arith.constant 0 : i32
    return %arg0, %c0_i32 : i32, i32
  }
  func.func @transform_1(%arg0: i32) -> (i32, i32) {
    %c0_i32 = arith.constant 0 : i32
    %c0_i32_0 = arith.constant 0 : i32
    %c0_i32_1 = arith.constant 0 : i32
    return %c0_i32, %c0_i32_0 : i32, i32
  }
  func.func @transform_2(%arg0: i32) -> (i32, i32) {
    %c0_i32 = arith.constant 0 : i32
    %c0_i32_0 = arith.constant 0 : i32
    %c0_i32_1 = arith.constant 0 : i32
    return %c0_i32, %c0_i32_0 : i32, i32
  }
  func.func @transform_3(%arg0: i32) -> (i32, i32) {
    %c0_i32 = arith.constant 0 : i32
    %c0_i32_0 = arith.constant 0 : i32
    %c0_i32_1 = arith.constant 0 : i32
    return %c0_i32, %c0_i32_0 : i32, i32
  }
  func.func @transform_4(%arg0: i32) -> (i32, i32) {
    %c0_i32 = arith.constant 0 : i32
    %c0_i32_0 = arith.constant 0 : i32
    %c0_i32_1 = arith.constant 0 : i32
    return %c0_i32, %c0_i32_0 : i32, i32
  }
  func.func @transform_5(%arg0: i32) -> (i32, i32) {
    %c0_i32 = arith.constant 0 : i32
    %c0_i32_0 = arith.constant 0 : i32
    %c0_i32_1 = arith.constant 0 : i32
    return %c0_i32, %c0_i32_0 : i32, i32
  }
  func.func @transform_6(%arg0: i32) -> (i32, i32) {
    %c0_i32 = arith.constant 0 : i32
    %c0_i32_0 = arith.constant 0 : i32
    %c0_i32_1 = arith.constant 0 : i32
    return %c0_i32, %c0_i32_0 : i32, i32
  }
  func.func @transform_7(%arg0: i32) -> (i32, i32) {
    %c0_i32 = arith.constant 0 : i32
    %c0_i32_0 = arith.constant 0 : i32
    return %arg0, %c0_i32 : i32, i32
  }
}

</mosaic_0001>

<llo_original>
// kernel: _lambda_.1
$region0: #{_lambda_.1}
  #allocation0 [shape = 'u32[]', space=smem, size = 0x4, offset = 0x4, fixed_abs, tag = 'smem constant byte address 0x4 - core index']
  #allocation1 [shape = 'u32[144,128]{1,0:T(1,128)}', space=vmem, size = 0x12000, scoped, tag = 'internal scratch']
  %s0 = inlined_call_operand.vmem [shape: f32[16,32], index: 0, kind: input, shape index: {}]
  %s1 = inlined_call_operand.vmem [shape: bf16[32,128], index: 1, kind: input, shape index: {}]
  %s2 = inlined_call_operand.vmem [shape: f32[1,128], index: 2, kind: input, shape index: {}]
  %s3 = inlined_call_operand.hbm [shape: bf16[128,128], index: 3, kind: input, shape index: {}]
  %s4 = inlined_call_operand.vmem [shape: f32[1,128], index: 4, kind: input, shape index: {}]
  %s5 = inlined_call_operand.hbm [shape: bf16[128,128], index: 5, kind: input, shape index: {}]
  %s6 = inlined_call_operand.vmem [shape: f32[1,128], index: 6, kind: input, shape index: {}]
  %s7 = inlined_call_operand.vmem [shape: bf16[16,128], index: 7, kind: output, shape index: {}]
  %s8 = sld [smem:[#allocation0]]
  $region46: #{_lambda_.1} parent=0
    _
  %s10 = ssub.s32 1, %s8
  %s11 = scalar_select 0, %s10, %s8
  $region1: #{_lambda_.1} parent=0
    #allocation2 [shape = 'u8[32768]{0}', space=vmem, size = 0x8000, scoped, tag = 'input window, operand 3, single buffered']
    #allocation3 [shape = 's32[1]{0}', space=sflag, size = 0x4, scoped, tag = 'scoped memory for _lambda_.1']
    #allocation4 [shape = 'u8[32768]{0}', space=vmem, size = 0x8000, scoped, tag = 'input window, operand 5, single buffered']
    #allocation5 [shape = 's32[1]{0}', space=sflag, size = 0x4, scoped, tag = 'scoped memory for _lambda_.1']
    %12 = vsyncpa [#allocation3], 0
    %13 = vsyncpa [#allocation5], 0
    // Predicated region
    $region2: #{_lambda_.1} parent=1 // pred_check
      _
    $region3: #{_lambda_.1} parent=1 // pred_check_branch
      %15 = sbr.rel (0) target = $region5
    $region4: #{_lambda_.1} parent=1 // pred_region
      _
    $region5: #{_lambda_.1} parent=1 // pred_fallthru
      _
    // Predicated region
    $region6: #{_lambda_.1} parent=1 // pred_check
      _
    $region7: #{_lambda_.1} parent=1 // pred_check_branch
      %17 = sbr.rel (0) target = $region9
    $region8: #{_lambda_.1} parent=1 // pred_region
      _
    $region9: #{_lambda_.1} parent=1 // pred_fallthru
      _
    // Predicated region
    $region10: #{_lambda_.1} parent=1 // pred_check
      _
    $region11: #{_lambda_.1} parent=1 // pred_check_branch
      %19 = sbr.rel (0) target = $region13
    $region12: #{_lambda_.1} parent=1 // pred_region
      _
    $region13: #{_lambda_.1} parent=1 // pred_fallthru
      _
    // Predicated region
    $region14: #{_lambda_.1} parent=1 // pred_check
      _
    $region15: #{_lambda_.1} parent=1 // pred_check_branch
      %21 = sbr.rel (0) target = $region17
    $region16: #{_lambda_.1} parent=1 // pred_region
      %s23 = ssub.s32 1024, 1024
      %24 = vsyncadd [#allocation3], %s23
      %s25 = sshll.u32 [#allocation2], 4
      %s26 = int_to_ptr.vmem [resolvable:$true] %s25
      %31 = dma.hbm_to_vmem [thread:$0]  %s3, 1024, %s26, [#allocation3], 64, 64, 4
    $region17: #{_lambda_.1} parent=1 // pred_fallthru
      _
    // Predicated region
    $region18: #{_lambda_.1} parent=1 // pred_check
      _
    $region19: #{_lambda_.1} parent=1 // pred_check_branch
      %33 = sbr.rel (0) target = $region21
    $region20: #{_lambda_.1} parent=1 // pred_region
      _
    $region21: #{_lambda_.1} parent=1 // pred_fallthru
      _
    // Predicated region
    $region22: #{_lambda_.1} parent=1 // pred_check
      _
    $region23: #{_lambda_.1} parent=1 // pred_check_branch
      %35 = sbr.rel (0) target = $region25
    $region24: #{_lambda_.1} parent=1 // pred_region
      %s37 = ssub.s32 1024, 1024
      %38 = vsyncadd [#allocation5], %s37
      %s39 = sshll.u32 [#allocation4], 4
      %s40 = int_to_ptr.vmem [resolvable:$true] %s39
      %45 = dma.hbm_to_vmem [thread:$0]  %s5, 1024, %s40, [#allocation5], 64, 64, 4
    $region25: #{_lambda_.1} parent=1 // pred_fallthru
      _
    // Predicated region
    $region26: #{_lambda_.1} parent=1 // pred_check
      _
    $region27: #{_lambda_.1} parent=1 // pred_check_branch
      %47 = sbr.rel (0) target = $region29
    $region28: #{_lambda_.1} parent=1 // pred_region
      _
    $region29: #{_lambda_.1} parent=1 // pred_fallthru
      _
    // Predicated region
    $region30: #{_lambda_.1} parent=1 // pred_check
      _
    $region31: #{_lambda_.1} parent=1 // pred_check_branch
      %49 = sbr.rel (0) target = $region33
    $region32: #{_lambda_.1} parent=1 // pred_region
      %50 = dma.done [#allocation3], 1024
    $region33: #{_lambda_.1} parent=1 // pred_fallthru
      _
    // Predicated region
    $region34: #{_lambda_.1} parent=1 // pred_check
      _
    $region35: #{_lambda_.1} parent=1 // pred_check_branch
      %52 = sbr.rel (0) target = $region37
    $region36: #{_lambda_.1} parent=1 // pred_region
      %53 = dma.done [#allocation5], 1024
    $region37: #{_lambda_.1} parent=1 // pred_fallthru
      _
    %v55 = vld [vmem:[%s0] sm:$0xff]
    %v56 = vld [vmem:[%s0 + $0x8] sm:$0xff]
    %v57 = vpack.c.bf16 %v56, %v55
    %v58 = vld [vmem:[%s1] sm:$0xf]
    %v59 = vld [vmem:[%s1 + $0x4] sm:$0xf]
    %v60 = vld [vmem:[%s1 + $0x8] sm:$0xf]
    %v61 = vld [vmem:[%s1 + $0xc] sm:$0xf]
    %v62 = vld [vmem:[%s2] sm:$0x1]
    %v64 = vlaneseq
    %v65 = vshrl.u32 %v64, 7
    %v66 = vsub.s32 0, %v65
    %v67 = vrot.slane %v62, %v66
    %v73 = vunpack.c.l.b16 %v58
    %v74 = vunpack.c.l.b16 %v59
    %v75 = vunpack.c.l.b16 %v60
    %v76 = vunpack.c.l.b16 %v61
    %v77 = vpack.c.b16 %v74, %v73
    %v78 = vpack.c.b16 %v76, %v75
    %vm81 = vcmask 261120
    %v83 = vsel %vm81, %v57, 0
    %85 = vmatprep.subr.bf16.mxu0 0
    %86 = vmatpush1.bf16.msra.mxu0 0
    %87 = vmatprep.subr.bf16.mxu0 0
    %88 = vmatpush1.bf16.msra.mxu0 0
    %89 = vmatprep.subr.bf16.mxu0 0
    %90 = vmatpush1.bf16.msra.mxu0 0
    %91 = vmatprep.subr.bf16.mxu0 0
    %92 = vmatpush1.bf16.msra.mxu0 0
    %93 = vmatprep.subr.bf16.mxu0 0
    %94 = vmatpush1.bf16.msra.mxu0 0
    %95 = vmatprep.subr.bf16.mxu0 0
    %96 = vmatpush1.bf16.msra.mxu0 0
    %97 = vmatprep.subr.bf16.mxu0 0
    %98 = vmatpush1.bf16.msra.mxu0 %v78
    %99 = vmatprep.subr.bf16.mxu0 0
    %100 = vmatpush1.bf16.msra.mxu0 %v77
    %101 = vmatprep.subr.bf16.mxu0 0
    %102 = vmatpush2.bf16.msra.mxu0 0
    %103 = vmatprep.subr.bf16.mxu0 0
    %104 = vmatpush2.bf16.msra.mxu0 0
    %105 = vmatprep.subr.bf16.mxu0 0
    %106 = vmatpush2.bf16.msra.mxu0 0
    %107 = vmatprep.subr.bf16.mxu0 0
    %108 = vmatpush2.bf16.msra.mxu0 0
    %109 = vmatprep.subr.bf16.mxu0 0
    %110 = vmatpush2.bf16.msra.mxu0 0
    %111 = vmatprep.subr.bf16.mxu0 0
    %112 = vmatpush2.bf16.msra.mxu0 0
    %113 = vmatprep.subr.bf16.mxu0 0
    %114 = vmatpush2.bf16.msra.mxu0 0
    %115 = vmatprep.subr.bf16.mxu0 0
    %116 = vmatpush2.bf16.msra.mxu0 0
    %117 = vmatprep.mubr.bf16.mxu0 0
    %118 = vmatmul.mubr.bf16.gmra.mxu0 %v83
    %v119 = vpop.f32.mrf.mxu0
    %v120 = vadd.f32 %v67, %v119
    %v121 = vpop.f32.mrf.mxu0
    %v122 = vpop.f32.mrf.mxu0
    %v123 = vadd.f32 %v67, %v122
    %v124 = vpop.f32.mrf.mxu0
    %125 = vdwg.mxu0
    %v126 = vmax.f32 %v120, 0.0
    %v127 = vmax.f32 %v123, 0.0
    %v128 = vpack.c.bf16 %v127, %v126
    %v129 = vld [vmem:[#allocation2] sm:$0xf]
    %v130 = vld [vmem:[#allocation2 + $0x4] sm:$0xf]
    %v131 = vld [vmem:[#allocation2 + $0x8] sm:$0xf]
    %v132 = vld [vmem:[#allocation2 + $0xc] sm:$0xf]
    %v133 = vld [vmem:[#allocation2 + $0x10] sm:$0xf]
    %v134 = vld [vmem:[#allocation2 + $0x14] sm:$0xf]
    %v135 = vld [vmem:[#allocation2 + $0x18] sm:$0xf]
    %v136 = vld [vmem:[#allocation2 + $0x1c] sm:$0xf]
    %v137 = vld [vmem:[#allocation2 + $0x20] sm:$0xf]
    %v138 = vld [vmem:[#allocation2 + $0x24] sm:$0xf]
    %v139 = vld [vmem:[#allocation2 + $0x28] sm:$0xf]
    %v140 = vld [vmem:[#allocation2 + $0x2c] sm:$0xf]
    %v141 = vld [vmem:[#allocation2 + $0x30] sm:$0xf]
    %v142 = vld [vmem:[#allocation2 + $0x34] sm:$0xf]
    %v143 = vld [vmem:[#allocation2 + $0x38] sm:$0xf]
    %v144 = vld [vmem:[#allocation2 + $0x3c] sm:$0xf]
    %v145 = vld [vmem:[%s4] sm:$0x1]
    %v147 = vlaneseq
    %v148 = vshrl.u32 %v147, 7
    %v149 = vsub.s32 0, %v148
    %v150 = vrot.slane %v145, %v149
    %v168 = vunpack.c.l.b16 %v129
    %v169 = vunpack.c.l.b16 %v130
    %v170 = vunpack.c.l.b16 %v131
    %v171 = vunpack.c.l.b16 %v132
    %v172 = vunpack.c.l.b16 %v133
    %v173 = vunpack.c.l.b16 %v134
    %v174 = vunpack.c.l.b16 %v135
    %v175 = vunpack.c.l.b16 %v136
    %v176 = vunpack.c.l.b16 %v137
    %v177 = vunpack.c.l.b16 %v138
    %v178 = vunpack.c.l.b16 %v139
    %v179 = vunpack.c.l.b16 %v140
    %v180 = vunpack.c.l.b16 %v141
    %v181 = vunpack.c.l.b16 %v142
    %v182 = vunpack.c.l.b16 %v143
    %v183 = vunpack.c.l.b16 %v144
    %v184 = vpack.c.b16 %v169, %v168
    %v185 = vpack.c.b16 %v171, %v170
    %v186 = vpack.c.b16 %v173, %v172
    %v187 = vpack.c.b16 %v175, %v174
    %v188 = vpack.c.b16 %v177, %v176
    %v189 = vpack.c.b16 %v179, %v178
    %v190 = vpack.c.b16 %v181, %v180
    %v191 = vpack.c.b16 %v183, %v182
    %200 = vmatprep.subr.bf16.mxu0 0
    %201 = vmatpush1.bf16.msra.mxu0 %v191
    %202 = vmatprep.subr.bf16.mxu0 0
    %203 = vmatpush1.bf16.msra.mxu0 %v190
    %204 = vmatprep.subr.bf16.mxu0 0
    %205 = vmatpush1.bf16.msra.mxu0 %v189
    %206 = vmatprep.subr.bf16.mxu0 0
    %207 = vmatpush1.bf16.msra.mxu0 %v188
    %208 = vmatprep.subr.bf16.mxu0 0
    %209 = vmatpush1.bf16.msra.mxu0 %v187
    %210 = vmatprep.subr.bf16.mxu0 0
    %211 = vmatpush1.bf16.msra.mxu0 %v186
    %212 = vmatprep.subr.bf16.mxu0 0
    %213 = vmatpush1.bf16.msra.mxu0 %v185
    %214 = vmatprep.subr.bf16.mxu0 0
    %215 = vmatpush1.bf16.msra.mxu0 %v184
    %216 = vmatprep.subr.bf16.mxu0 0
    %217 = vmatpush2.bf16.msra.mxu0 0
    %218 = vmatprep.subr.bf16.mxu0 0
    %219 = vmatpush2.bf16.msra.mxu0 0
    %220 = vmatprep.subr.bf16.mxu0 0
    %221 = vmatpush2.bf16.msra.mxu0 0
    %222 = vmatprep.subr.bf16.mxu0 0
    %223 = vmatpush2.bf16.msra.mxu0 0
    %224 = vmatprep.subr.bf16.mxu0 0
    %225 = vmatpush2.bf16.msra.mxu0 0
    %226 = vmatprep.subr.bf16.mxu0 0
    %227 = vmatpush2.bf16.msra.mxu0 0
    %228 = vmatprep.subr.bf16.mxu0 0
    %229 = vmatpush2.bf16.msra.mxu0 0
    %230 = vmatprep.subr.bf16.mxu0 0
    %231 = vmatpush2.bf16.msra.mxu0 0
    %232 = vmatprep.mubr.bf16.mxu0 0
    %233 = vmatmul.mubr.bf16.gmra.mxu0 %v128
    %v234 = vpop.f32.mrf.mxu0
    %v235 = vadd.f32 %v150, %v234
    %v236 = vpop.f32.mrf.mxu0
    %v237 = vpop.f32.mrf.mxu0
    %v238 = vadd.f32 %v150, %v237
    %v239 = vpop.f32.mrf.mxu0
    %240 = vdwg.mxu0
    %v241 = vmax.f32 %v235, 0.0
    %v242 = vmax.f32 %v238, 0.0
    %v243 = vpack.c.bf16 %v242, %v241
    %v244 = vld [vmem:[#allocation4] sm:$0xf]
    %v245 = vld [vmem:[#allocation4 + $0x4] sm:$0xf]
    %v246 = vld [vmem:[#allocation4 + $0x8] sm:$0xf]
    %v247 = vld [vmem:[#allocation4 + $0xc] sm:$0xf]
    %v248 = vld [vmem:[#allocation4 + $0x10] sm:$0xf]
    %v249 = vld [vmem:[#allocation4 + $0x14] sm:$0xf]
    %v250 = vld [vmem:[#allocation4 + $0x18] sm:$0xf]
    %v251 = vld [vmem:[#allocation4 + $0x1c] sm:$0xf]
    %v252 = vld [vmem:[#allocation4 + $0x20] sm:$0xf]
    %v253 = vld [vmem:[#allocation4 + $0x24] sm:$0xf]
    %v254 = vld [vmem:[#allocation4 + $0x28] sm:$0xf]
    %v255 = vld [vmem:[#allocation4 + $0x2c] sm:$0xf]
    %v256 = vld [vmem:[#allocation4 + $0x30] sm:$0xf]
    %v257 = vld [vmem:[#allocation4 + $0x34] sm:$0xf]
    %v258 = vld [vmem:[#allocation4 + $0x38] sm:$0xf]
    %v259 = vld [vmem:[#allocation4 + $0x3c] sm:$0xf]
    %v260 = vld [vmem:[%s6] sm:$0x1]
    %v262 = vlaneseq
    %v263 = vshrl.u32 %v262, 7
    %v264 = vsub.s32 0, %v263
    %v265 = vrot.slane %v260, %v264
    %v283 = vunpack.c.l.b16 %v244
    %v284 = vunpack.c.l.b16 %v245
    %v285 = vunpack.c.l.b16 %v246
    %v286 = vunpack.c.l.b16 %v247
    %v287 = vunpack.c.l.b16 %v248
    %v288 = vunpack.c.l.b16 %v249
    %v289 = vunpack.c.l.b16 %v250
    %v290 = vunpack.c.l.b16 %v251
    %v291 = vunpack.c.l.b16 %v252
    %v292 = vunpack.c.l.b16 %v253
    %v293 = vunpack.c.l.b16 %v254
    %v294 = vunpack.c.l.b16 %v255
    %v295 = vunpack.c.l.b16 %v256
    %v296 = vunpack.c.l.b16 %v257
    %v297 = vunpack.c.l.b16 %v258
    %v298 = vunpack.c.l.b16 %v259
    %v299 = vpack.c.b16 %v284, %v283
    %v300 = vpack.c.b16 %v286, %v285
    %v301 = vpack.c.b16 %v288, %v287
    %v302 = vpack.c.b16 %v290, %v289
    %v303 = vpack.c.b16 %v292, %v291
    %v304 = vpack.c.b16 %v294, %v293
    %v305 = vpack.c.b16 %v296, %v295
    %v306 = vpack.c.b16 %v298, %v297
    %315 = vmatprep.subr.bf16.mxu0 0
    %316 = vmatpush1.bf16.msra.mxu0 %v306
    %317 = vmatprep.subr.bf16.mxu0 0
    %318 = vmatpush1.bf16.msra.mxu0 %v305
    %319 = vmatprep.subr.bf16.mxu0 0
    %320 = vmatpush1.bf16.msra.mxu0 %v304
    %321 = vmatprep.subr.bf16.mxu0 0
    %322 = vmatpush1.bf16.msra.mxu0 %v303
    %323 = vmatprep.subr.bf16.mxu0 0
    %324 = vmatpush1.bf16.msra.mxu0 %v302
    %325 = vmatprep.subr.bf16.mxu0 0
    %326 = vmatpush1.bf16.msra.mxu0 %v301
    %327 = vmatprep.subr.bf16.mxu0 0
    %328 = vmatpush1.bf16.msra.mxu0 %v300
    %329 = vmatprep.subr.bf16.mxu0 0
    %330 = vmatpush1.bf16.msra.mxu0 %v299
    %331 = vmatprep.subr.bf16.mxu0 0
    %332 = vmatpush2.bf16.msra.mxu0 0
    %333 = vmatprep.subr.bf16.mxu0 0
    %334 = vmatpush2.bf16.msra.mxu0 0
    %335 = vmatprep.subr.bf16.mxu0 0
    %336 = vmatpush2.bf16.msra.mxu0 0
    %337 = vmatprep.subr.bf16.mxu0 0
    %338 = vmatpush2.bf16.msra.mxu0 0
    %339 = vmatprep.subr.bf16.mxu0 0
    %340 = vmatpush2.bf16.msra.mxu0 0
    %341 = vmatprep.subr.bf16.mxu0 0
    %342 = vmatpush2.bf16.msra.mxu0 0
    %343 = vmatprep.subr.bf16.mxu0 0
    %344 = vmatpush2.bf16.msra.mxu0 0
    %345 = vmatprep.subr.bf16.mxu0 0
    %346 = vmatpush2.bf16.msra.mxu0 0
    %347 = vmatprep.mubr.bf16.mxu0 0
    %348 = vmatmul.mubr.bf16.gmra.mxu0 %v243
    %v349 = vpop.f32.mrf.mxu0
    %v350 = vadd.f32 %v265, %v349
    %v351 = vpop.f32.mrf.mxu0
    %v352 = vpop.f32.mrf.mxu0
    %v353 = vadd.f32 %v265, %v352
    %v354 = vpop.f32.mrf.mxu0
    %355 = vdwg.mxu0
    %v356 = vpack.c.bf16 %v353, %v350
    %v358 = vunpack.c.l.b16 %v356
    %v359 = vunpack.c.h.b16 %v356
    %v360 = vpack.c.b16 %v358, %v358
    %v361 = vpack.c.b16 %v359, %v359
    %364 = vst [vmem:[%s7] sm:$0xf] %v360
    %365 = vst [vmem:[%s7 + $0x4] sm:$0xf] %v361
    // Predicated region
    $region38: #{_lambda_.1} parent=1 // pred_check
      _
    $region39: #{_lambda_.1} parent=1 // pred_check_branch
      %367 = sbr.rel (0) target = $region41
    $region40: #{_lambda_.1} parent=1 // pred_region
      _
    $region41: #{_lambda_.1} parent=1 // pred_fallthru
      _
    // Predicated region
    $region42: #{_lambda_.1} parent=1 // pred_check
      _
    $region43: #{_lambda_.1} parent=1 // pred_check_branch
      %369 = sbr.rel (0) target = $region45
    $region44: #{_lambda_.1} parent=1 // pred_region
      _
    $region45: #{_lambda_.1} parent=1 // pred_fallthru
      _
    %370 = vsyncpa [#allocation3], 1
    %371 = vsyncpa [#allocation5], 1

</llo_original>
